<compile_context>
chip_gen: v7x
topology: tpu7x:2x2x1
jax: 0.10.0
libtpu: 0.0.40
codegen_flags: <defaults>
</compile_context>

<pallas_src>
import math

import jax
import jax.numpy as jnp
from jax.experimental import pallas as pl
from jax.experimental.pallas import tpu as pltpu

LANE = 128
_MIB = 2 ** 20


def _round_up(x, m):
    return (x + m - 1) // m * m


def _pad2d(a, rows, cols):
    r, c = a.shape
    if r == rows and c == cols:
        return a
    return jnp.pad(a, ((0, rows - r), (0, cols - c)))


def _itemsize(dt):
    return jnp.dtype(dt).itemsize


def _vmem_capacity_bytes():
    """Per-TensorCore VMEM capacity (generation-aware), with a safe fallback."""
    try:
        return int(pltpu.get_tpu_info().vmem_capacity_bytes)
    except Exception:
        return 128 * _MIB


# --------------------------- kernels: fused (weights resident) ---------------

def _resblock_kernel_proj(x_ref, wf_ref, bf_ref, w2_ref, b2_ref, o_ref):
    """Projection shortcut. wf = [w1 | ws] fused along N: one MXU pass over x."""
    x = x_ref[...].astype(wf_ref.dtype)           # in-kernel cast (no HBM pre-pass)
    hs = jnp.dot(x, wf_ref[...], preferred_element_type=jnp.float32) + bf_ref[...]
    n = w2_ref.shape[0]                           # padded hidden width (mult of 128)
    h = jnp.maximum(hs[:, :n], 0.0)               # linear1 output + ReLU (f32)
    sc = hs[:, n:]                                # shortcut branch (f32)
    out = jnp.dot(h.astype(w2_ref.dtype), w2_ref[...],
                  preferred_element_type=jnp.float32) + b2_ref[...]
    o_ref[...] = jnp.maximum(out + sc, 0.0).astype(o_ref.dtype)


def _resblock_kernel_id(x_ref, w1_ref, b1_ref, w2_ref, b2_ref, o_ref):
    """Identity shortcut (in_features == out_features); residual added in f32."""
    xin = x_ref[...]
    h = jnp.dot(xin.astype(w1_ref.dtype), w1_ref[...],
                preferred_element_type=jnp.float32) + b1_ref[...]
    h = jnp.maximum(h, 0.0)
    out = jnp.dot(h.astype(w2_ref.dtype), w2_ref[...],
                  preferred_element_type=jnp.float32) + b2_ref[...]
    o_ref[...] = jnp.maximum(out + xin.astype(jnp.float32), 0.0).astype(o_ref.dtype)


# --------------------------- kernels: N-tiled fallback -----------------------

def _resblock_kernel_proj_ntiled(x_ref, w1_ref, b1_ref, w2_ref, b2_ref,
                                 ws_ref, bs_ref, o_ref, h_ref):
    """w1/b1 resident; w2/ws/b2/bs column-tiled over inner grid axis j."""
    @pl.when(pl.program_id(1) == 0)
    def _():
        xh = x_ref[...].astype(w1_ref.dtype)
        h = jnp.dot(xh, w1_ref[...], preferred_element_type=jnp.float32) + b1_ref[...]
        h_ref[...] = jnp.maximum(h, 0.0).astype(h_ref.dtype)
    xs = x_ref[...].astype(ws_ref.dtype)
    sc = jnp.dot(xs, ws_ref[...], preferred_element_type=jnp.float32) + bs_ref[...]
    out = jnp.dot(h_ref[...], w2_ref[...],
                  preferred_element_type=jnp.float32) + b2_ref[...]
    o_ref[...] = jnp.maximum(out + sc, 0.0).astype(o_ref.dtype)


def _resblock_kernel_id_ntiled(x_ref, w1_ref, b1_ref, w2_ref, b2_ref, o_ref, h_ref):
    """Identity shortcut, column-tiled output; residual slice taken from f32 x."""
    j = pl.program_id(1)

    @pl.when(j == 0)
    def _():
        xh = x_ref[...].astype(w1_ref.dtype)
        h = jnp.dot(xh, w1_ref[...], preferred_element_type=jnp.float32) + b1_ref[...]
        h_ref[...] = jnp.maximum(h, 0.0).astype(h_ref.dtype)

    tn = o_ref.shape[1]
    col0 = pl.multiple_of(j * tn, 128)
    res = x_ref[:, pl.ds(col0, tn)].astype(jnp.float32)
    out = jnp.dot(h_ref[...], w2_ref[...],
                  preferred_element_type=jnp.float32) + b2_ref[...]
    o_ref[...] = jnp.maximum(out + res, 0.0).astype(o_ref.dtype)


# --------------------------- parameter preparation (hoisted) -----------------

def prepare_params(params, *, compute_dtype=jnp.bfloat16):
    """Pad/cast/fuse the weights ONCE (hoisted out of the per-call path).

    Weights are stored [in, out]. Feature dims are zero-padded to multiples of
    128 (lane-dense), matmul inputs cast to bf16, biases kept in f32.
    """
    F_in, F_out = params["w1"].shape
    F_in_p = _round_up(F_in, LANE)
    F_out_p = _round_up(F_out, LANE)
    # TODO(synk): pad to multiples of 256 on v6e/v7x (2x256x256 MXU) when F lands
    # on an odd multiple of 128 (e.g. 384) for better MXU fill.
    prep = {
        "F_in": F_in, "F_out": F_out, "F_in_p": F_in_p, "F_out_p": F_out_p,
        "has_proj": "ws" in params, "compute_dtype": compute_dtype,
        "w1": _pad2d(params["w1"], F_in_p, F_out_p).astype(compute_dtype),
        "b1": _pad2d(params["b1"], 1, F_out_p).astype(jnp.float32),
        "w2": _pad2d(params["w2"], F_out_p, F_out_p).astype(compute_dtype),
        "b2": _pad2d(params["b2"], 1, F_out_p).astype(jnp.float32),
    }
    if prep["has_proj"]:
        ws = _pad2d(params["ws"], F_in_p, F_out_p).astype(compute_dtype)
        bs = _pad2d(params["bs"], 1, F_out_p).astype(jnp.float32)
        prep["ws"], prep["bs"] = ws, bs
        # Fused [w1 | ws] for the single-pass-over-x resident path.
        prep["wf"] = jnp.concatenate([prep["w1"], ws], axis=1)
        prep["bf"] = jnp.concatenate([prep["b1"], bs], axis=1)
    return prep


# --------------------------- wrapper ------------------------------------------

def residual_block(x, prep, *, tile_b=None, tile_n=None, force_tiled_n=False):
    """ResidualBlock forward. `prep` is the output of prepare_params()."""
    B, F_in = x.shape
    assert F_in == prep["F_in"], (F_in, prep["F_in"])
    F_in_p, F_out_p, F_out = prep["F_in_p"], prep["F_out_p"], prep["F_out"]
    has_proj = prep["has_proj"]
    cdt = prep["compute_dtype"]
    out_dtype = x.dtype
    w_bpe = _itemsize(cdt)
    x_bpe = _itemsize(x.dtype)
    o_bpe = _itemsize(out_dtype)

    capacity = _vmem_capacity_bytes()            # per-TensorCore
    budget = capacity - 8 * _MIB                 # headroom for Mosaic scratch

    # Batch tile: 512 on 128-MiB parts (v5e/v6e), 256 on v7x (64 MiB/TC).
    if tile_b is None:
        tile_b = 512 if capacity >= 100 * _MIB else 256
    if B < tile_b:
        tile_b = max(B, 16)
    tile_b = _round_up(tile_b, 16)
    B_p = _round_up(B, tile_b)
    n_b = B_p // tile_b

    n_fused = (2 * F_out_p) if has_proj else F_out_p

    # Resident weight bytes for the fused path (weights single-buffered).
    fused_weight_bytes = (F_in_p * n_fused * w_bpe + n_fused * 4
                          + F_out_p * F_out_p * w_bpe + F_out_p * 4)

    small_f = F_in_p <= 512 and F_out_p <= 512
    x_nbuf = 3 if (small_f and n_b >= 3) else 2  # deeper pipe when mem-bound

    def _fused_vmem(tb):
        stream = (x_nbuf * tb * F_in_p * x_bpe          # x tiles
                  + 2 * tb * F_out_p * o_bpe)           # out tiles
        inter = tb * (n_fused * 4                       # hs / h in f32
                      + F_out_p * 4                     # out accumulator (f32)
                      + F_in_p * w_bpe                  # x cast to compute dtype
                      + F_out_p * w_bpe)                # h cast to compute dtype
        return stream + fused_weight_bytes + inter + 2 * _MIB

    use_tiled = force_tiled_n or (_fused_vmem(tile_b) > budget)

    # x streams in its original dtype (no wrapper cast pass); pad only if needed.
    xp = x if (B_p == B and F_in_p == F_in) else jnp.pad(
        x, ((0, B_p - B), (0, F_in_p - F_in)))

    flops = 2 * B_p * (F_in_p * n_fused + F_out_p * F_out_p)
    bytes_accessed = int(B_p * F_in_p * x_bpe + B_p * F_out_p * o_bpe
                         + fused_weight_bytes)
    cost = pl.CostEstimate(flops=int(flops), transcendentals=0,
                           bytes_accessed=bytes_accessed)

    if not use_tiled:
        # ---------------- fused path: all weights VMEM-resident ----------------
        if has_proj:
            kernel = _resblock_kernel_proj
            weights = (prep["wf"], prep["bf"], prep["w2"], prep["b2"])
        else:
            kernel = _resblock_kernel_id
            weights = (prep["w1"], prep["b1"], prep["w2"], prep["b2"])
        in_specs = [pl.BlockSpec((tile_b, F_in_p), lambda i: (i, 0),
                                 pipeline_mode=pl.Buffered(x_nbuf))]
        in_specs += [pl.BlockSpec(w.shape, lambda i: (0, 0),
                                  pipeline_mode=pl.Buffered(1))   # single copy
                     for w in weights]
        out_specs = pl.BlockSpec((tile_b, F_out_p), lambda i: (i, 0))
        grid = (n_b,)
        dims = ("parallel",)
        scratch = []
        args = (xp,) + weights
        vmem_need = _fused_vmem(tile_b)
    else:
        # ------ N-tiled fallback: w1/b1 resident, w2/ws column-tiled over j ----
        if tile_n is None:
            tile_n = 512 if F_out_p % 512 == 0 else (
                256 if F_out_p % 256 == 0 else 128)
        n_n = F_out_p // tile_n
        if has_proj:
            kernel = _resblock_kernel_proj_ntiled
            weights = (prep["w1"], prep["b1"], prep["w2"], prep["b2"],
                       prep["ws"], prep["bs"])
            tiled_flags = (False, False, True, True, True, True)
        else:
            kernel = _resblock_kernel_id_ntiled
            weights = (prep["w1"], prep["b1"], prep["w2"], prep["b2"])
            tiled_flags = (False, False, True, True)
        in_specs = [pl.BlockSpec((tile_b, F_in_p), lambda i, j: (i, 0))]
        for w, tiled in zip(weights, tiled_flags):
            if tiled:
                in_specs.append(pl.BlockSpec((w.shape[0], tile_n),
                                             lambda i, j: (0, j)))
            else:
                in_specs.append(pl.BlockSpec(w.shape, lambda i, j: (0, 0),
                                             pipeline_mode=pl.Buffered(1)))
        out_specs = pl.BlockSpec((tile_b, tile_n), lambda i, j: (i, j))
        grid = (n_b, n_n)
        dims = ("parallel", "arbitrary")
        scratch = [pltpu.VMEM((tile_b, F_out_p), cdt)]   # hidden activation h
        args = (xp,) + weights
        resident = F_in_p * F_out_p * w_bpe + F_out_p * 4
        stream = 2 * (tile_b * F_in_p * x_bpe + tile_b * tile_n * o_bpe
                      + F_out_p * tile_n * w_bpe + tile_n * 4)
        if has_proj:
            stream += 2 * (F_in_p * tile_n * w_bpe + tile_n * 4)
        inter = tile_b * (F_in_p * w_bpe + F_out_p * 4 + 2 * tile_n * 4)
        vmem_need = (resident + stream + inter
                     + tile_b * F_out_p * w_bpe + 2 * _MIB)
        # TODO(synk): if w1 alone exceeds the per-core budget, add a K-tiled
        # variant with an f32 accumulator and pl.when init/finalize.

    vmem_limit = int(min(max(vmem_need, 32 * _MIB), budget))

    y = pl.pallas_call(
        kernel,
        out_shape=jax.ShapeDtypeStruct((B_p, F_out_p), out_dtype),
        grid=grid,
        in_specs=in_specs,
        out_specs=out_specs,
        scratch_shapes=scratch,
        compiler_params=pltpu.CompilerParams(
            dimension_semantics=dims, vmem_limit_bytes=vmem_limit),
        cost_estimate=cost,
    )(*args)
    return y[:B, :F_out]


# --------------------------- init + reference --------------------------------

def _init_linear(key, fan_in, fan_out):
    """Deterministic init mimicking nn.Linear defaults (weights stored [in, out])."""
    kw, kb = jax.random.split(key)
    bound = 1.0 / math.sqrt(fan_in)
    w = jax.random.uniform(kw, (fan_in, fan_out), jnp.float32, -bound, bound)
    b = jax.random.uniform(kb, (1, fan_out), jnp.float32, -bound, bound)
    return w, b


def make_params(key, in_features, out_features):
    k1, k2, k3 = jax.random.split(key, 3)
    w1, b1 = _init_linear(k1, in_features, out_features)
    w2, b2 = _init_linear(k2, out_features, out_features)
    params = {"w1": w1, "b1": b1, "w2": w2, "b2": b2}
    if in_features != out_features:
        ws, bs = _init_linear(k3, in_features, out_features)
        params["ws"] = ws
        params["bs"] = bs
    return params


def residual_block_ref(x, params, compute_dtype=jnp.float32):
    """Pure-JAX reference of the PyTorch forward.

    compute_dtype=f32 mirrors PyTorch; compute_dtype=bf16 mirrors the kernel's
    matmul precision (identity residual stays f32 in both, as in the kernel).
    """
    cd = compute_dtype
    h = jnp.dot(x.astype(cd), params["w1"].astype(cd),
                preferred_element_type=jnp.float32) + params["b1"]
    h = jnp.maximum(h, 0.0)
    out = jnp.dot(h.astype(cd), params["w2"].astype(cd),
                  preferred_element_type=jnp.float32) + params["b2"]
    if "ws" in params:
        sc = jnp.dot(x.astype(cd), params["ws"].astype(cd),
                     preferred_element_type=jnp.float32) + params["bs"]
    else:
        sc = x.astype(jnp.float32)
    return jnp.maximum(out + sc, 0.0).astype(x.dtype)


def _check(y, x, params):
    assert jnp.allclose(y, residual_block_ref(x, params, jnp.bfloat16),
                        atol=2e-3, rtol=2e-3)
    assert jnp.allclose(y, residual_block_ref(x, params, jnp.float32),
                        atol=5e-2, rtol=5e-2)


# --------------------------- main ---------------------------------------------

if __name__ == "__main__":
    key = jax.random.PRNGKey(0)
    kx1, kx2, kx3, kx4, kp1, kp2, kp3, kp4 = jax.random.split(key, 8)

    # Case 1: projection shortcut (in != out), fused resident-weight path.
    B, F_in, F_out = 8, 32, 64
    x1 = jax.random.normal(kx1, (B, F_in), dtype=jnp.float32)
    p1 = make_params(kp1, F_in, F_out)
    prep1 = prepare_params(p1)
    y1 = jax.block_until_ready(residual_block(x1, prep1))
    assert y1.shape == (B, F_out)
    _check(y1, x1, p1)

    # Case 2: identity shortcut (in == out), fused path, f32 residual.
    p2 = make_params(kp2, F_out, F_out)
    x2 = jax.random.normal(kx2, (B, F_out), dtype=jnp.float32)
    prep2 = prepare_params(p2)
    y2 = jax.block_until_ready(residual_block(x2, prep2))
    assert y2.shape == (B, F_out)
    _check(y2, x2, p2)

    # Case 3: projection shortcut, N-tiled fallback path (forced; 2 column tiles).
    B3, F_in3, F_out3 = 32, 192, 256
    x3 = jax.random.normal(kx3, (B3, F_in3), dtype=jnp.float32)
    p3 = make_params(kp3, F_in3, F_out3)
    prep3 = prepare_params(p3)
    y3 = jax.block_until_ready(
        residual_block(x3, prep3, force_tiled_n=True, tile_n=128))
    assert y3.shape == (B3, F_out3)
    _check(y3, x3, p3)

    # Case 4: identity shortcut, N-tiled fallback path (forced; 2 column tiles).
    B4, F4 = 32, 256
    x4 = jax.random.normal(kx4, (B4, F4), dtype=jnp.float32)
    p4 = make_params(kp4, F4, F4)
    prep4 = prepare_params(p4)
    y4 = jax.block_until_ready(
        residual_block(x4, prep4, force_tiled_n=True, tile_n=128))
    assert y4.shape == (B4, F4)
    _check(y4, x4, p4)

    print("KERNEL_OK")
</pallas_src>

<mosaic_0001>
module attributes {stable_mosaic.version = 11 : i64} {
  func.func @_resblock_kernel_proj(%arg0: i32, %arg1: memref<16x128xf32, #tpu.memory_space<vmem>>, %arg2: memref<128x256xbf16, #tpu.memory_space<vmem>>, %arg3: memref<1x256xf32, #tpu.memory_space<vmem>>, %arg4: memref<128x128xbf16, #tpu.memory_space<vmem>>, %arg5: memref<1x128xf32, #tpu.memory_space<vmem>>, %arg6: memref<16x128xf32, #tpu.memory_space<vmem>>) attributes {dimension_semantics = [#tpu.dimension_semantics<parallel>], iteration_bounds = array<i64: 1>, scalar_prefetch = 0 : i64, scratch_operands = 0 : i64, tpu.core_type = #tpu.core_type<tc>, window_params = [{pipeline_mode = #tpu.pipeline_mode<double_buffered>, transform_indices = @transform_0, window_bounds = array<i64: 16, 128>}, {pipeline_mode = #tpu.pipeline_mode<synchronous>, transform_indices = @transform_1, window_bounds = array<i64: 128, 256>}, {pipeline_mode = #tpu.pipeline_mode<synchronous>, transform_indices = @transform_2, window_bounds = array<i64: 1, 256>}, {pipeline_mode = #tpu.pipeline_mode<synchronous>, transform_indices = @transform_3, window_bounds = array<i64: 128, 128>}, {pipeline_mode = #tpu.pipeline_mode<synchronous>, transform_indices = @transform_4, window_bounds = array<i64: 1, 128>}, {transform_indices = @transform_5, window_bounds = array<i64: 16, 128>}]} {
    %c0 = arith.constant 0 : index
    %c0_0 = arith.constant 0 : index
    %0 = vector.load %arg1[%c0, %c0_0] : memref<16x128xf32, #tpu.memory_space<vmem>>, vector<16x128xf32>
    %1 = arith.truncf %0 : vector<16x128xf32> to vector<16x128xbf16>
    %c0_1 = arith.constant 0 : index
    %c0_2 = arith.constant 0 : index
    %2 = vector.load %arg2[%c0_1, %c0_2] : memref<128x256xbf16, #tpu.memory_space<vmem>>, vector<128x256xbf16>
    %cst = arith.constant dense<0.000000e+00> : vector<16x256xf32>
    %3 = tpu.matmul %1, %2, %cst {dimension_numbers = #tpu.dot_dimension_numbers<[1], [0], [0], [1], [0, 0, 1, 1], [], []>} : vector<16x128xbf16>, vector<128x256xbf16>, vector<16x256xf32> -> vector<16x256xf32>
    %c0_3 = arith.constant 0 : index
    %c0_4 = arith.constant 0 : index
    %4 = vector.load %arg3[%c0_3, %c0_4] : memref<1x256xf32, #tpu.memory_space<vmem>>, vector<1x256xf32>
    %5 = vector.broadcast %4 : vector<1x256xf32> to vector<16x256xf32>
    %6 = arith.addf %3, %5 : vector<16x256xf32>
    %7 = vector.extract_strided_slice %6 {offsets = [0, 0], sizes = [16, 128], strides = [1, 1]} : vector<16x256xf32> to vector<16x128xf32>
    %cst_5 = arith.constant 0.000000e+00 : f32
    %8 = vector.broadcast %cst_5 : f32 to vector<16x128xf32>
    %9 = arith.maximumf %7, %8 : vector<16x128xf32>
    %10 = vector.extract_strided_slice %6 {offsets = [0, 128], sizes = [16, 128], strides = [1, 1]} : vector<16x256xf32> to vector<16x128xf32>
    %11 = arith.truncf %9 : vector<16x128xf32> to vector<16x128xbf16>
    %c0_6 = arith.constant 0 : index
    %c0_7 = arith.constant 0 : index
    %12 = vector.load %arg4[%c0_6, %c0_7] : memref<128x128xbf16, #tpu.memory_space<vmem>>, vector<128x128xbf16>
    %cst_8 = arith.constant dense<0.000000e+00> : vector<16x128xf32>
    %13 = tpu.matmul %11, %12, %cst_8 {dimension_numbers = #tpu.dot_dimension_numbers<[1], [0], [0], [1], [0, 0, 1, 1], [], []>} : vector<16x128xbf16>, vector<128x128xbf16>, vector<16x128xf32> -> vector<16x128xf32>
    %c0_9 = arith.constant 0 : index
    %c0_10 = arith.constant 0 : index
    %14 = vector.load %arg5[%c0_9, %c0_10] : memref<1x128xf32, #tpu.memory_space<vmem>>, vector<1x128xf32>
    %15 = vector.broadcast %14 : vector<1x128xf32> to vector<16x128xf32>
    %16 = arith.addf %13, %15 : vector<16x128xf32>
    %17 = arith.addf %16, %10 : vector<16x128xf32>
    %cst_11 = arith.constant 0.000000e+00 : f32
    %18 = vector.broadcast %cst_11 : f32 to vector<16x128xf32>
    %19 = arith.maximumf %17, %18 : vector<16x128xf32>
    %c0_12 = arith.constant 0 : index
    %c0_13 = arith.constant 0 : index
    %20 = vector.load %arg6[%c0_12, %c0_13] : memref<16x128xf32, #tpu.memory_space<vmem>>, vector<16x128xf32>
    tpu.vector_store %arg6[%c0_12, %c0_13], %19 {strides = array<i32>} : memref<16x128xf32, #tpu.memory_space<vmem>>, vector<16x128xf32>,
    return
  }
  func.func @transform_0(%arg0: i32) -> (i32, i32) {
    %c0_i32 = arith.constant 0 : i32
    %c0_i32_0 = arith.constant 0 : i32
    return %arg0, %c0_i32 : i32, i32
  }
  func.func @transform_1(%arg0: i32) -> (i32, i32) {
    %c0_i32 = arith.constant 0 : i32
    %c0_i32_0 = arith.constant 0 : i32
    %c0_i32_1 = arith.constant 0 : i32
    return %c0_i32, %c0_i32_0 : i32, i32
  }
  func.func @transform_2(%arg0: i32) -> (i32, i32) {
    %c0_i32 = arith.constant 0 : i32
    %c0_i32_0 = arith.constant 0 : i32
    %c0_i32_1 = arith.constant 0 : i32
    return %c0_i32, %c0_i32_0 : i32, i32
  }
  func.func @transform_3(%arg0: i32) -> (i32, i32) {
    %c0_i32 = arith.constant 0 : i32
    %c0_i32_0 = arith.constant 0 : i32
    %c0_i32_1 = arith.constant 0 : i32
    return %c0_i32, %c0_i32_0 : i32, i32
  }
  func.func @transform_4(%arg0: i32) -> (i32, i32) {
    %c0_i32 = arith.constant 0 : i32
    %c0_i32_0 = arith.constant 0 : i32
    %c0_i32_1 = arith.constant 0 : i32
    return %c0_i32, %c0_i32_0 : i32, i32
  }
  func.func @transform_5(%arg0: i32) -> (i32, i32) {
    %c0_i32 = arith.constant 0 : i32
    %c0_i32_0 = arith.constant 0 : i32
    return %arg0, %c0_i32 : i32, i32
  }
}

</mosaic_0001>

<llo_original>
// kernel: tpu_custom_call.1
$region0: #{tpu_custom_call.1}
  #allocation0 [shape = 'u32[]', space=smem, size = 0x4, offset = 0x4, fixed_abs, tag = 'smem constant byte address 0x4 - core index']
  #allocation1 [shape = 'u32[144,128]{1,0:T(1,128)}', space=vmem, size = 0x12000, scoped, tag = 'internal scratch']
  %s0 = inlined_call_operand.hbm [shape: f32[16,128], index: 0, kind: input, shape index: {}]
  %s1 = inlined_call_operand.hbm [shape: bf16[128,256], index: 1, kind: input, shape index: {}]
  %s2 = inlined_call_operand.vmem [shape: f32[1,256], index: 2, kind: input, shape index: {}]
  %s3 = inlined_call_operand.hbm [shape: bf16[128,128], index: 3, kind: input, shape index: {}]
  %s4 = inlined_call_operand.vmem [shape: f32[1,128], index: 4, kind: input, shape index: {}]
  %s5 = inlined_call_operand.hbm [shape: f32[16,128], index: 5, kind: output, shape index: {}]
  %s6 = sld [smem:[#allocation0]]
  $region42: #{tpu_custom_call.1} parent=0
    _
  %s8 = ssub.s32 1, %s6
  %s9 = scalar_select 0, %s8, %s6
  $region1: #{tpu_custom_call.1} parent=0
    #allocation2 [shape = 'u8[8192]{0}', space=vmem, size = 0x2000, scoped, tag = 'input window, operand 0, single buffered']
    #allocation3 [shape = 's32[1]{0}', space=sflag, size = 0x4, scoped, tag = 'scoped memory for tpu_custom_call.1']
    #allocation4 [shape = 's32[1]{0}', space=sflag, size = 0x4, scoped, tag = 'scoped memory for tpu_custom_call.1']
    #allocation5 [shape = 'u8[65536]{0}', space=vmem, size = 0x10000, scoped, tag = 'input window, operand 1, single buffered']
    #allocation6 [shape = 's32[1]{0}', space=sflag, size = 0x4, scoped, tag = 'scoped memory for tpu_custom_call.1']
    #allocation7 [shape = 'u8[32768]{0}', space=vmem, size = 0x8000, scoped, tag = 'input window, operand 3, single buffered']
    #allocation8 [shape = 'u8[8192]{0}', space=vmem, size = 0x2000, scoped, tag = 'output window, operand 0, single buffered']
    %10 = vsyncpa [#allocation3], 0
    %11 = vsyncpa [#allocation6], 0
    %12 = vsyncpa [#allocation4], 0
    // Predicated region
    $region2: #{tpu_custom_call.1} parent=1 // pred_check
      _
    $region3: #{tpu_custom_call.1} parent=1 // pred_check_branch
      %14 = sbr.rel (0) target = $region5
    $region4: #{tpu_custom_call.1} parent=1 // pred_region
      %s16 = ssub.s32 256, 256
      %17 = vsyncadd [#allocation3], %s16
      %s18 = sshll.u32 [#allocation2], 4
      %s19 = int_to_ptr.vmem [resolvable:$true] %s18
      %24 = dma.hbm_to_vmem [thread:$0]  %s0, 256, %s19, [#allocation3], 128, 128, 8
    $region5: #{tpu_custom_call.1} parent=1 // pred_fallthru
      _
    // Predicated region
    $region6: #{tpu_custom_call.1} parent=1 // pred_check
      _
    $region7: #{tpu_custom_call.1} parent=1 // pred_check_branch
      %26 = sbr.rel (0) target = $region9
    $region8: #{tpu_custom_call.1} parent=1 // pred_region
      %s28 = ssub.s32 2048, 2048
      %29 = vsyncadd [#allocation6], %s28
      %s30 = sshll.u32 [#allocation5], 4
      %s31 = int_to_ptr.vmem [resolvable:$true] %s30
      %36 = dma.hbm_to_vmem [thread:$0]  %s1, 2048, %s31, [#allocation6], 128, 128, 8
    $region9: #{tpu_custom_call.1} parent=1 // pred_fallthru
      _
    // Predicated region
    $region10: #{tpu_custom_call.1} parent=1 // pred_check
      _
    $region11: #{tpu_custom_call.1} parent=1 // pred_check_branch
      %38 = sbr.rel (0) target = $region13
    $region12: #{tpu_custom_call.1} parent=1 // pred_region
      _
    $region13: #{tpu_custom_call.1} parent=1 // pred_fallthru
      _
    // Predicated region
    $region14: #{tpu_custom_call.1} parent=1 // pred_check
      _
    $region15: #{tpu_custom_call.1} parent=1 // pred_check_branch
      %40 = sbr.rel (0) target = $region17
    $region16: #{tpu_custom_call.1} parent=1 // pred_region
      %s42 = ssub.s32 1024, 1024
      %43 = vsyncadd [#allocation6], %s42
      %s44 = sshll.u32 [#allocation7], 4
      %s45 = int_to_ptr.vmem [resolvable:$true] %s44
      %50 = dma.hbm_to_vmem [thread:$0]  %s3, 1024, %s45, [#allocation6], 64, 64, 4
    $region17: #{tpu_custom_call.1} parent=1 // pred_fallthru
      _
    // Predicated region
    $region18: #{tpu_custom_call.1} parent=1 // pred_check
      _
    $region19: #{tpu_custom_call.1} parent=1 // pred_check_branch
      %52 = sbr.rel (0) target = $region21
    $region20: #{tpu_custom_call.1} parent=1 // pred_region
      _
    $region21: #{tpu_custom_call.1} parent=1 // pred_fallthru
      _
    // Predicated region
    $region22: #{tpu_custom_call.1} parent=1 // pred_check
      _
    $region23: #{tpu_custom_call.1} parent=1 // pred_check_branch
      %54 = sbr.rel (0) target = $region25
    $region24: #{tpu_custom_call.1} parent=1 // pred_region
      %55 = dma.done [#allocation3], 256
    $region25: #{tpu_custom_call.1} parent=1 // pred_fallthru
      _
    // Predicated region
    $region26: #{tpu_custom_call.1} parent=1 // pred_check
      _
    $region27: #{tpu_custom_call.1} parent=1 // pred_check_branch
      %57 = sbr.rel (0) target = $region29
    $region28: #{tpu_custom_call.1} parent=1 // pred_region
      %58 = dma.done [#allocation6], 2048
    $region29: #{tpu_custom_call.1} parent=1 // pred_fallthru
      _
    // Predicated region
    $region30: #{tpu_custom_call.1} parent=1 // pred_check
      _
    $region31: #{tpu_custom_call.1} parent=1 // pred_check_branch
      %60 = sbr.rel (0) target = $region33
    $region32: #{tpu_custom_call.1} parent=1 // pred_region
      %61 = dma.done [#allocation6], 1024
    $region33: #{tpu_custom_call.1} parent=1 // pred_fallthru
      _
    %v63 = vld [vmem:[#allocation2] sm:$0xff]
    %v64 = vld [vmem:[#allocation2 + $0x8] sm:$0xff]
    %v65 = vpack.c.bf16 %v64, %v63
    %v66 = vld [vmem:[#allocation5] sm:$0xff]
    %v67 = vld [vmem:[#allocation5 + $0x8] sm:$0xff]
    %v68 = vld [vmem:[#allocation5 + $0x10] sm:$0xff]
    %v69 = vld [vmem:[#allocation5 + $0x18] sm:$0xff]
    %v70 = vld [vmem:[#allocation5 + $0x20] sm:$0xff]
    %v71 = vld [vmem:[#allocation5 + $0x28] sm:$0xff]
    %v72 = vld [vmem:[#allocation5 + $0x30] sm:$0xff]
    %v73 = vld [vmem:[#allocation5 + $0x38] sm:$0xff]
    %v74 = vld [vmem:[#allocation5 + $0x40] sm:$0xff]
    %v75 = vld [vmem:[#allocation5 + $0x48] sm:$0xff]
    %v76 = vld [vmem:[#allocation5 + $0x50] sm:$0xff]
    %v77 = vld [vmem:[#allocation5 + $0x58] sm:$0xff]
    %v78 = vld [vmem:[#allocation5 + $0x60] sm:$0xff]
    %v79 = vld [vmem:[#allocation5 + $0x68] sm:$0xff]
    %v80 = vld [vmem:[#allocation5 + $0x70] sm:$0xff]
    %v81 = vld [vmem:[#allocation5 + $0x78] sm:$0xff]
    %v82 = vld [vmem:[%s2] sm:$0x3]
    %v84 = vlaneseq
    %v85 = vshrl.u32 %v84, 7
    %v86 = vsub.s32 0, %v85
    %v87 = vrot.slane %v82, %v86
    %v88 = vlaneseq
    %v89 = vshrl.u32 %v88, 7
    %v90 = vsub.s32 1, %v89
    %v91 = vrot.slane %v82, %v90
    %v110 = vunpack.c.l.b16 %v66
    %v111 = vunpack.c.h.b16 %v66
    %v112 = vunpack.c.l.b16 %v67
    %v113 = vunpack.c.h.b16 %v67
    %v114 = vunpack.c.l.b16 %v68
    %v115 = vunpack.c.h.b16 %v68
    %v116 = vunpack.c.l.b16 %v69
    %v117 = vunpack.c.h.b16 %v69
    %v118 = vunpack.c.l.b16 %v70
    %v119 = vunpack.c.h.b16 %v70
    %v120 = vunpack.c.l.b16 %v71
    %v121 = vunpack.c.h.b16 %v71
    %v122 = vunpack.c.l.b16 %v72
    %v123 = vunpack.c.h.b16 %v72
    %v124 = vunpack.c.l.b16 %v73
    %v125 = vunpack.c.h.b16 %v73
    %v126 = vunpack.c.l.b16 %v74
    %v127 = vunpack.c.h.b16 %v74
    %v128 = vunpack.c.l.b16 %v75
    %v129 = vunpack.c.h.b16 %v75
    %v130 = vunpack.c.l.b16 %v76
    %v131 = vunpack.c.h.b16 %v76
    %v132 = vunpack.c.l.b16 %v77
    %v133 = vunpack.c.h.b16 %v77
    %v134 = vunpack.c.l.b16 %v78
    %v135 = vunpack.c.h.b16 %v78
    %v136 = vunpack.c.l.b16 %v79
    %v137 = vunpack.c.h.b16 %v79
    %v138 = vunpack.c.l.b16 %v80
    %v139 = vunpack.c.h.b16 %v80
    %v140 = vunpack.c.l.b16 %v81
    %v141 = vunpack.c.h.b16 %v81
    %v142 = vpack.c.b16 %v112, %v110
    %v143 = vpack.c.b16 %v113, %v111
    %v144 = vpack.c.b16 %v116, %v114
    %v145 = vpack.c.b16 %v117, %v115
    %v146 = vpack.c.b16 %v120, %v118
    %v147 = vpack.c.b16 %v121, %v119
    %v148 = vpack.c.b16 %v124, %v122
    %v149 = vpack.c.b16 %v125, %v123
    %v150 = vpack.c.b16 %v128, %v126
    %v151 = vpack.c.b16 %v129, %v127
    %v152 = vpack.c.b16 %v132, %v130
    %v153 = vpack.c.b16 %v133, %v131
    %v154 = vpack.c.b16 %v136, %v134
    %v155 = vpack.c.b16 %v137, %v135
    %v156 = vpack.c.b16 %v140, %v138
    %v157 = vpack.c.b16 %v141, %v139
    %174 = vmatprep.subr.bf16.mxu0 %v143
    %175 = vmatpush1.bf16.msra.mxu0 %v142
    %176 = vmatprep.subr.bf16.mxu0 %v145
    %177 = vmatpush1.bf16.msra.mxu0 %v144
    %178 = vmatprep.subr.bf16.mxu0 %v147
    %179 = vmatpush1.bf16.msra.mxu0 %v146
    %180 = vmatprep.subr.bf16.mxu0 %v149
    %181 = vmatpush1.bf16.msra.mxu0 %v148
    %182 = vmatprep.subr.bf16.mxu0 %v151
    %183 = vmatpush1.bf16.msra.mxu0 %v150
    %184 = vmatprep.subr.bf16.mxu0 %v153
    %185 = vmatpush1.bf16.msra.mxu0 %v152
    %186 = vmatprep.subr.bf16.mxu0 %v155
    %187 = vmatpush1.bf16.msra.mxu0 %v154
    %188 = vmatprep.subr.bf16.mxu0 %v157
    %189 = vmatpush1.bf16.msra.mxu0 %v156
    %190 = vmatprep.subr.bf16.mxu0 0
    %191 = vmatpush1.bf16.msra.mxu0 0
    %192 = vmatprep.subr.bf16.mxu0 0
    %193 = vmatpush1.bf16.msra.mxu0 0
    %194 = vmatprep.subr.bf16.mxu0 0
    %195 = vmatpush1.bf16.msra.mxu0 0
    %196 = vmatprep.subr.bf16.mxu0 0
    %197 = vmatpush1.bf16.msra.mxu0 0
    %198 = vmatprep.subr.bf16.mxu0 0
    %199 = vmatpush1.bf16.msra.mxu0 0
    %200 = vmatprep.subr.bf16.mxu0 0
    %201 = vmatpush1.bf16.msra.mxu0 0
    %202 = vmatprep.subr.bf16.mxu0 0
    %203 = vmatpush1.bf16.msra.mxu0 0
    %204 = vmatprep.subr.bf16.mxu0 0
    %205 = vmatpush1.bf16.msra.mxu0 0
    %206 = vmatprep.mubr.bf16.mxu0 0
    %207 = vmatmul.mubr.bf16.gmra.mrb[0].mxu0 %v65
    %v208 = vpop.f32.mrb[0].mxu0
    %v209 = vadd.f32 %v87, %v208
    %v210 = vpop.f32.mrb[0].mxu0
    %v211 = vadd.f32 %v91, %v210
    %v212 = vpop.f32.mrb[0].mxu0
    %v213 = vadd.f32 %v87, %v212
    %v214 = vpop.f32.mrb[0].mxu0
    %v215 = vadd.f32 %v91, %v214
    %216 = vdwg.mxu0
    %v217 = vmax.f32 %v209, 0.0
    %v218 = vmax.f32 %v213, 0.0
    %v219 = vpack.c.bf16 %v218, %v217
    %v220 = vld [vmem:[#allocation7] sm:$0xf]
    %v221 = vld [vmem:[#allocation7 + $0x4] sm:$0xf]
    %v222 = vld [vmem:[#allocation7 + $0x8] sm:$0xf]
    %v223 = vld [vmem:[#allocation7 + $0xc] sm:$0xf]
    %v224 = vld [vmem:[#allocation7 + $0x10] sm:$0xf]
    %v225 = vld [vmem:[#allocation7 + $0x14] sm:$0xf]
    %v226 = vld [vmem:[#allocation7 + $0x18] sm:$0xf]
    %v227 = vld [vmem:[#allocation7 + $0x1c] sm:$0xf]
    %v228 = vld [vmem:[#allocation7 + $0x20] sm:$0xf]
    %v229 = vld [vmem:[#allocation7 + $0x24] sm:$0xf]
    %v230 = vld [vmem:[#allocation7 + $0x28] sm:$0xf]
    %v231 = vld [vmem:[#allocation7 + $0x2c] sm:$0xf]
    %v232 = vld [vmem:[#allocation7 + $0x30] sm:$0xf]
    %v233 = vld [vmem:[#allocation7 + $0x34] sm:$0xf]
    %v234 = vld [vmem:[#allocation7 + $0x38] sm:$0xf]
    %v235 = vld [vmem:[#allocation7 + $0x3c] sm:$0xf]
    %v236 = vld [vmem:[%s4] sm:$0x1]
    %v238 = vlaneseq
    %v239 = vshrl.u32 %v238, 7
    %v240 = vsub.s32 0, %v239
    %v241 = vrot.slane %v236, %v240
    %v259 = vunpack.c.l.b16 %v220
    %v260 = vunpack.c.l.b16 %v221
    %v261 = vunpack.c.l.b16 %v222
    %v262 = vunpack.c.l.b16 %v223
    %v263 = vunpack.c.l.b16 %v224
    %v264 = vunpack.c.l.b16 %v225
    %v265 = vunpack.c.l.b16 %v226
    %v266 = vunpack.c.l.b16 %v227
    %v267 = vunpack.c.l.b16 %v228
    %v268 = vunpack.c.l.b16 %v229
    %v269 = vunpack.c.l.b16 %v230
    %v270 = vunpack.c.l.b16 %v231
    %v271 = vunpack.c.l.b16 %v232
    %v272 = vunpack.c.l.b16 %v233
    %v273 = vunpack.c.l.b16 %v234
    %v274 = vunpack.c.l.b16 %v235
    %v275 = vpack.c.b16 %v260, %v259
    %v276 = vpack.c.b16 %v262, %v261
    %v277 = vpack.c.b16 %v264, %v263
    %v278 = vpack.c.b16 %v266, %v265
    %v279 = vpack.c.b16 %v268, %v267
    %v280 = vpack.c.b16 %v270, %v269
    %v281 = vpack.c.b16 %v272, %v271
    %v282 = vpack.c.b16 %v274, %v273
    %291 = vmatprep.subr.bf16.mxu0 0
    %292 = vmatpush1.bf16.msra.mxu0 %v275
    %293 = vmatprep.subr.bf16.mxu0 0
    %294 = vmatpush1.bf16.msra.mxu0 %v276
    %295 = vmatprep.subr.bf16.mxu0 0
    %296 = vmatpush1.bf16.msra.mxu0 %v277
    %297 = vmatprep.subr.bf16.mxu0 0
    %298 = vmatpush1.bf16.msra.mxu0 %v278
    %299 = vmatprep.subr.bf16.mxu0 0
    %300 = vmatpush1.bf16.msra.mxu0 %v279
    %301 = vmatprep.subr.bf16.mxu0 0
    %302 = vmatpush1.bf16.msra.mxu0 %v280
    %303 = vmatprep.subr.bf16.mxu0 0
    %304 = vmatpush1.bf16.msra.mxu0 %v281
    %305 = vmatprep.subr.bf16.mxu0 0
    %306 = vmatpush1.bf16.msra.mxu0 %v282
    %307 = vmatprep.subr.bf16.mxu0 0
    %308 = vmatpush1.bf16.msra.mxu0 0
    %309 = vmatprep.subr.bf16.mxu0 0
    %310 = vmatpush1.bf16.msra.mxu0 0
    %311 = vmatprep.subr.bf16.mxu0 0
    %312 = vmatpush1.bf16.msra.mxu0 0
    %313 = vmatprep.subr.bf16.mxu0 0
    %314 = vmatpush1.bf16.msra.mxu0 0
    %315 = vmatprep.subr.bf16.mxu0 0
    %316 = vmatpush1.bf16.msra.mxu0 0
    %317 = vmatprep.subr.bf16.mxu0 0
    %318 = vmatpush1.bf16.msra.mxu0 0
    %319 = vmatprep.subr.bf16.mxu0 0
    %320 = vmatpush1.bf16.msra.mxu0 0
    %321 = vmatprep.subr.bf16.mxu0 0
    %322 = vmatpush1.bf16.msra.mxu0 0
    %323 = vmatprep.mubr.bf16.mxu0 0
    %324 = vmatmul.mubr.bf16.gmra.mrb[0].mxu0 %v219
    %v325 = vpop.f32.mrb[0].mxu0
    %v326 = vadd.f32 %v241, %v325
    %v327 = vpop.f32.mrb[0].mxu0
    %v328 = vpop.f32.mrb[0].mxu0
    %v329 = vadd.f32 %v241, %v328
    %v330 = vpop.f32.mrb[0].mxu0
    %331 = vdwg.mxu0
    %v332 = vadd.f32 %v326, %v211
    %v333 = vadd.f32 %v329, %v215
    %v334 = vmax.f32 %v332, 0.0
    %v335 = vmax.f32 %v333, 0.0
    %336 = vst [vmem:[#allocation8] sm:$0xff] %v334
    %337 = vst [vmem:[#allocation8 + $0x8] sm:$0xff] %v335
    // Predicated region
    $region34: #{tpu_custom_call.1} parent=1 // pred_check
      _
    $region35: #{tpu_custom_call.1} parent=1 // pred_check_branch
      %339 = sbr.rel (0) target = $region37
    $region36: #{tpu_custom_call.1} parent=1 // pred_region
      %s341 = ssub.s32 256, 256
      %342 = vsyncadd [#allocation4], %s341
      %s343 = sshll.u32 [#allocation8], 4
      %s344 = int_to_ptr.vmem [resolvable:$true] %s343
      %349 = dma.vmem_to_hbm [thread:$0]  %s344, 256, %s5, [#allocation4], 128, 128, 8
    $region37: #{tpu_custom_call.1} parent=1 // pred_fallthru
      _
    // Predicated region
    $region38: #{tpu_custom_call.1} parent=1 // pred_check
      _
    $region39: #{tpu_custom_call.1} parent=1 // pred_check_branch
      %351 = sbr.rel (0) target = $region41
    $region40: #{tpu_custom_call.1} parent=1 // pred_region
      %352 = dma.done [#allocation4], 256
    $region41: #{tpu_custom_call.1} parent=1 // pred_fallthru
      _
    %353 = vsyncpa [#allocation3], 1
    %354 = vsyncpa [#allocation6], 1
    %355 = vsyncpa [#allocation4], 1

</llo_original>
